<compile_context>
chip_gen: v7x
topology: tpu7x:2x2x1
jax: 0.10.0
libtpu: 0.0.40
codegen_flags: <defaults>
</compile_context>

<pallas_src>
import jax
import jax.numpy as jnp
from jax import lax
from jax.experimental import pallas as pl
from jax.experimental.pallas import tpu as pltpu


# ----------------------------------------------------------------------------
# wrapper-side precomputed operand builders (plain JAX, run once per call)
# ----------------------------------------------------------------------------
def _col_weight_mats(Win, Wout, Cin, Cout, stride, w_hwio):
    """(3*Win*Cin, Wout*Cout) weight slab, dy blocks stacked along K (dy = -1, 0, +1):
    B[dy][iw*Cin+ci, ow*Cout+co] = sum_dx W[dy, dx, ci, co] * [iw == ow*s + dx]
    (handles W tap shift, stride, zero padding and the channel contraction)."""
    iw = jnp.arange(Win)
    ow = jnp.arange(Wout)
    mats = []
    for kh in range(3):                       # kh = 0,1,2  <->  dy = -1,0,+1
        acc = jnp.zeros((Win, Cin, Wout, Cout), jnp.float32)
        for kw, dx in enumerate((-1, 0, 1)):
            sel = (iw[:, None] == (ow * stride + dx)[None, :]).astype(jnp.float32)
            acc = acc + sel[:, None, :, None] * w_hwio[kh, kw][None, :, None, :]
        mats.append(acc.reshape(Win * Cin, Wout * Cout))
    return jnp.concatenate(mats, axis=0)      # (3*Win*Cin, Wout*Cout)


def _channel_agg_mat(Wout, Cout):
    """(L, L) 0/1 matrix, L = Wout*Cout: (r, L) @ agg sums each per-lane row over all
    W groups of the same channel and broadcasts the result back to every lane."""
    lane = jnp.arange(Wout * Cout)
    return (lane[:, None] % Cout == lane[None, :] % Cout).astype(jnp.float32)


def _downsample_mat(N, Hin, Hout, stride):
    """(N*Hout, N*Hin) 0/1: row n*Hout+oh selects input row n*Hin + oh*stride.
    Only used for stride > 1 (conv1 H-downsampling)."""
    r_out = jnp.arange(N * Hout)
    r_in = jnp.arange(N * Hin)
    src = (r_out // Hout) * Hin + (r_out % Hout) * stride
    return (r_in[None, :] == src[:, None]).astype(jnp.float32)


# ----------------------------------------------------------------------------
# fused kernel:  conv1 -> BN1 -> ReLU -> conv2 -> BN2 -> ReLU, all lane-dense
# ----------------------------------------------------------------------------
def _make_block_kernel(mxu_dtype, Hin, H1, stride, count, eps=1e-5):
    inv_cnt = 1.0 / float(count)              # 1 / (N * H1 * W1) per channel

    def shift_rows(x, dy):
        """out[r] = x[r + dy]; rows without an in-array source become 0."""
        if dy == 0:
            return x
        zeros = jnp.zeros((abs(dy), x.shape[1]), x.dtype)
        if dy > 0:
            return jnp.concatenate([x[dy:, :], zeros], axis=0)
        return jnp.concatenate([zeros, x[:dy, :]], axis=0)

    def taps_cat(x, h_img):
        """(M, K) -> (M, 3K): the dy = -1, 0, +1 taps of the 3x3 H-stencil, each a
        row-shifted copy with per-image padding rows zeroed, concatenated along K."""
        ih = lax.broadcasted_iota(jnp.int32, x.shape, 0) % h_img
        pieces = []
        for dy in (-1, 0, 1):
            if dy == 0:
                pieces.append(x)
            else:
                valid = jnp.logical_and(ih + dy >= 0, ih + dy < h_img)
                pieces.append(jnp.where(valid, shift_rows(x, dy), 0.0))
        return jnp.concatenate(pieces, axis=-1)

    def bn_relu(y, agg, bn):
        """Training-mode BatchNorm2d (biased batch variance) + ReLU, lane-dense."""
        stats = jnp.concatenate([jnp.sum(y, axis=0, keepdims=True),
                                 jnp.sum(y * y, axis=0, keepdims=True)], axis=0)
        cstats = jnp.dot(stats, agg, preferred_element_type=jnp.float32)   # (2, L)
        mean = cstats[0:1, :] * inv_cnt
        var = cstats[1:2, :] * inv_cnt - mean * mean
        scale = bn[0:1, :] * lax.rsqrt(var + eps)          # gamma * rsqrt -> EUP
        shift = bn[1:2, :] - mean * scale                  # beta - mean*scale
        return jnp.maximum(y * scale + shift, 0.0)

    def kernel(*refs):
        if stride > 1:
            x_ref, d_ref, b1_ref, b2_ref, agg_ref, bn1_ref, bn2_ref, out_ref = refs
        else:
            x_ref, b1_ref, b2_ref, agg_ref, bn1_ref, bn2_ref, out_ref = refs
        agg = agg_ref[...]

        # ---- conv1: taps along K, one MXU matmul (K = 3*Win*Cin) ----
        xa = taps_cat(x_ref[...], Hin)                     # (N*Hin, 3*Win*Cin) f32
        if stride > 1:                                     # exact 0/1 row downsample
            xa = jnp.dot(d_ref[...], xa, preferred_element_type=jnp.float32)
        y1 = jnp.dot(xa.astype(mxu_dtype), b1_ref[...],
                     preferred_element_type=jnp.float32)   # (N*H1, W1*Cout) f32
        y1 = bn_relu(y1, agg, bn1_ref[...])

        # ---- conv2 (always stride 1): K = 3*W1*Cout ----
        xa2 = taps_cat(y1, H1)                             # (N*H1, 3*W1*Cout) f32
        y2 = jnp.dot(xa2.astype(mxu_dtype), b2_ref[...],
                     preferred_element_type=jnp.float32)
        y2 = bn_relu(y2, agg, bn2_ref[...])

        out_ref[...] = y2.astype(out_ref.dtype)            # lane-dense (N*H1, W1*Cout)

    return kernel


def basic_block_noshortcut(x_nchw, w1, g1, b1, w2, g2, b2, *, stride=1,
                           mxu_dtype=jnp.bfloat16):
    """x_nchw: (N, Cin, H, W); w1: (Cout, Cin, 3, 3); w2: (Cout, Cout, 3, 3)."""
    N, Cin, Hin, Win = x_nchw.shape
    Cout = w1.shape[0]
    H1 = (Hin + 2 - 3) // stride + 1
    W1 = (Win + 2 - 3) // stride + 1
    L = W1 * Cout

    # NCHW -> lane-dense (N*H, W*C) slab (padding handled inside the kernel / B slabs)
    x2d = jnp.transpose(x_nchw.astype(jnp.float32),
                        (0, 2, 3, 1)).reshape(N * Hin, Win * Cin)

    w1_hwio = jnp.transpose(w1, (2, 3, 1, 0)).astype(jnp.float32)   # (3,3,Cin,Cout)
    w2_hwio = jnp.transpose(w2, (2, 3, 1, 0)).astype(jnp.float32)   # (3,3,Cout,Cout)

    b1m = _col_weight_mats(Win, W1, Cin, Cout, stride, w1_hwio)     # (3*Win*Cin, L)
    b2m = _col_weight_mats(W1, W1, Cout, Cout, 1, w2_hwio)          # (3*W1*Cout, L)
    agg = _channel_agg_mat(W1, Cout)                                # (L, L) f32
    bn1 = jnp.stack([jnp.tile(g1.astype(jnp.float32), W1),
                     jnp.tile(b1.astype(jnp.float32), W1)])         # (2, L)
    bn2 = jnp.stack([jnp.tile(g2.astype(jnp.float32), W1),
                     jnp.tile(b2.astype(jnp.float32), W1)])

    kernel = _make_block_kernel(mxu_dtype, Hin, H1, stride, count=N * H1 * W1)

    args = [x2d]
    if stride > 1:
        args.append(_downsample_mat(N, Hin, H1, stride))
    args += [b1m.astype(mxu_dtype), b2m.astype(mxu_dtype), agg, bn1, bn2]

    vmem = pl.BlockSpec(memory_space=pltpu.MemorySpace.VMEM)
    out2d = pl.pallas_call(
        kernel,
        out_shape=jax.ShapeDtypeStruct((N * H1, L), jnp.float32),
        in_specs=[vmem] * len(args),
        out_specs=vmem,
    )(*args)

    return jnp.transpose(out2d.reshape(N, H1, W1, Cout), (0, 3, 1, 2))   # NCHW


# ----------------------------------------------------------------------------
# pure-JAX reference of the PyTorch forward (training-mode BN, batch statistics)
# ----------------------------------------------------------------------------
def _reference(x, w1, g1, b1, w2, g2, b2, stride=1):
    def conv(x, w, s):
        return lax.conv_general_dilated(
            x, w, (s, s), ((1, 1), (1, 1)),
            dimension_numbers=("NCHW", "OIHW", "NCHW"))

    def bn(y, g, b, eps=1e-5):
        mean = y.mean(axis=(0, 2, 3), keepdims=True)
        var = ((y - mean) ** 2).mean(axis=(0, 2, 3), keepdims=True)
        return ((y - mean) * lax.rsqrt(var + eps) * g.reshape(1, -1, 1, 1)
                + b.reshape(1, -1, 1, 1))

    out = jax.nn.relu(bn(conv(x, w1, stride), g1, b1))
    out = jax.nn.relu(bn(conv(out, w2, 1), g2, b2))
    return out


if __name__ == "__main__":
    # small shapes consistent with the module: batch=2, in_planes=4, planes=8,
    # spatial 16x16  (=> W1*Cout = 128, exactly one lane-dense vreg row at stride 1)
    N, Cin, Cout, H, W = 2, 4, 8, 16, 16

    key = jax.random.PRNGKey(0)
    kx, k1, k2, kg1, kb1, kg2, kb2 = jax.random.split(key, 7)

    x = jax.random.normal(kx, (N, Cin, H, W), jnp.float32)
    w1 = jax.random.normal(k1, (Cout, Cin, 3, 3), jnp.float32) * (2.0 / (Cin * 9)) ** 0.5
    w2 = jax.random.normal(k2, (Cout, Cout, 3, 3), jnp.float32) * (2.0 / (Cout * 9)) ** 0.5
    g1 = 1.0 + 0.1 * jax.random.normal(kg1, (Cout,), jnp.float32)
    b1 = 0.1 * jax.random.normal(kb1, (Cout,), jnp.float32)
    g2 = 1.0 + 0.1 * jax.random.normal(kg2, (Cout,), jnp.float32)
    b2 = 0.1 * jax.random.normal(kb2, (Cout,), jnp.float32)

    # 1) exact-semantics path: f32 MXU operands, stride=1, tight tolerance
    ref = jax.block_until_ready(_reference(x, w1, g1, b1, w2, g2, b2, 1))
    out_f32 = jax.block_until_ready(
        basic_block_noshortcut(x, w1, g1, b1, w2, g2, b2, stride=1,
                               mxu_dtype=jnp.float32))
    assert out_f32.shape == (N, Cout, H, W), out_f32.shape
    assert bool(jnp.all(jnp.isfinite(out_f32)))
    assert float(jnp.max(jnp.abs(out_f32 - ref))) < 2e-3, \
        float(jnp.max(jnp.abs(out_f32 - ref)))

    # 2) default perf path: bf16 MXU operands (v6e/v7x native), f32 accumulation/BN.
    #    bf16 conv operands are an accuracy choice; rel-L2 vs f32 reference < 5e-2.
    out_bf = jax.block_until_ready(
        basic_block_noshortcut(x, w1, g1, b1, w2, g2, b2, stride=1))
    assert out_bf.shape == (N, Cout, H, W), out_bf.shape
    assert bool(jnp.all(jnp.isfinite(out_bf)))
    rel_l2 = float(jnp.sqrt(jnp.sum((out_bf - ref) ** 2) /
                            (jnp.sum(ref ** 2) + 1e-12)))
    assert rel_l2 < 5e-2, rel_l2

    # 3) stride=2 fallback path (single 0/1 downsample matmul), f32 exact
    ref_s2 = jax.block_until_ready(_reference(x, w1, g1, b1, w2, g2, b2, 2))
    out_s2 = jax.block_until_ready(
        basic_block_noshortcut(x, w1, g1, b1, w2, g2, b2, stride=2,
                               mxu_dtype=jnp.float32))
    assert out_s2.shape == (N, Cout, H // 2, W // 2), out_s2.shape
    assert float(jnp.max(jnp.abs(out_s2 - ref_s2))) < 2e-3, \
        float(jnp.max(jnp.abs(out_s2 - ref_s2)))

    print("KERNEL_OK")
</pallas_src>

<mosaic_0001>
module attributes {stable_mosaic.version = 11 : i64} {
  func.func @kernel(%arg0: memref<32x64xf32, #tpu.memory_space<vmem>>, %arg1: memref<192x128xf32, #tpu.memory_space<vmem>>, %arg2: memref<384x128xf32, #tpu.memory_space<vmem>>, %arg3: memref<128x128xf32, #tpu.memory_space<vmem>>, %arg4: memref<2x128xf32, #tpu.memory_space<vmem>>, %arg5: memref<2x128xf32, #tpu.memory_space<vmem>>, %arg6: memref<32x128xf32, #tpu.memory_space<vmem>>) attributes {dimension_semantics = [], scalar_prefetch = 0 : i64, scratch_operands = 0 : i64, tpu.core_type = #tpu.core_type<tc>} {
    %c0 = arith.constant 0 : index
    %c0_0 = arith.constant 0 : index
    %0 = vector.load %arg3[%c0, %c0_0] : memref<128x128xf32, #tpu.memory_space<vmem>>, vector<128x128xf32>
    %c0_1 = arith.constant 0 : index
    %c0_2 = arith.constant 0 : index
    %1 = vector.load %arg0[%c0_1, %c0_2] : memref<32x64xf32, #tpu.memory_space<vmem>>, vector<32x64xf32>
    %2 = tpu.iota {dimensions = array<i32: 0>} : vector<32x64xi32>
    %c16_i32 = arith.constant 16 : i32
    %c0_i32 = arith.constant 0 : i32
    %3 = arith.cmpi eq, %c16_i32, %c0_i32 : i32
    %c1_i32 = arith.constant 1 : i32
    %4 = arith.select %3, %c1_i32, %c16_i32 : i32
    %5 = vector.broadcast %4 : i32 to vector<32x64xi32>
    %6 = arith.remsi %2, %5 : vector<32x64xi32>
    %c0_i32_3 = arith.constant 0 : i32
    %7 = vector.broadcast %c0_i32_3 : i32 to vector<32x64xi32>
    %8 = arith.cmpi ne, %6, %7 : vector<32x64xi32>
    %c0_i32_4 = arith.constant 0 : i32
    %9 = vector.broadcast %c0_i32_4 : i32 to vector<32x64xi32>
    %10 = arith.cmpi slt, %6, %9 : vector<32x64xi32>
    %c0_i32_5 = arith.constant 0 : i32
    %11 = arith.cmpi slt, %4, %c0_i32_5 : i32
    %12 = vector.broadcast %11 : i1 to vector<32x64xi1>
    %13 = vector.broadcast %12 : vector<32x64xi1> to vector<32x64xi1>
    %14 = arith.xori %10, %13 : vector<32x64xi1>
    %15 = arith.andi %14, %8 : vector<32x64xi1>
    %16 = vector.broadcast %4 : i32 to vector<32x64xi32>
    %17 = arith.addi %6, %16 : vector<32x64xi32>
    %18 = arith.select %15, %17, %6 : vector<32x64xi1>, vector<32x64xi32>
    %c-1_i32 = arith.constant -1 : i32
    %19 = vector.broadcast %c-1_i32 : i32 to vector<32x64xi32>
    %20 = arith.addi %18, %19 : vector<32x64xi32>
    %c0_i32_6 = arith.constant 0 : i32
    %21 = vector.broadcast %c0_i32_6 : i32 to vector<32x64xi32>
    %22 = arith.cmpi sge, %20, %21 : vector<32x64xi32>
    %c-1_i32_7 = arith.constant -1 : i32
    %23 = vector.broadcast %c-1_i32_7 : i32 to vector<32x64xi32>
    %24 = arith.addi %18, %23 : vector<32x64xi32>
    %c16_i32_8 = arith.constant 16 : i32
    %25 = vector.broadcast %c16_i32_8 : i32 to vector<32x64xi32>
    %26 = arith.cmpi slt, %24, %25 : vector<32x64xi32>
    %27 = arith.andi %22, %26 : vector<32x64xi1>
    %cst = arith.constant 0.000000e+00 : f32
    %28 = vector.broadcast %cst : f32 to vector<1x64xf32>
    %29 = vector.extract_strided_slice %1 {offsets = [0, 0], sizes = [31, 64], strides = [1, 1]} : vector<32x64xf32> to vector<31x64xf32>
    %30 = tpu.concatenate %28, %29 in 0 : vector<1x64xf32>, vector<31x64xf32> -> vector<32x64xf32>
    %cst_9 = arith.constant 0.000000e+00 : f32
    %31 = vector.broadcast %cst_9 : f32 to vector<32x64xf32>
    %32 = arith.select %27, %30, %31 : vector<32x64xi1>, vector<32x64xf32>
    %c1_i32_10 = arith.constant 1 : i32
    %33 = vector.broadcast %c1_i32_10 : i32 to vector<32x64xi32>
    %34 = arith.addi %18, %33 : vector<32x64xi32>
    %c0_i32_11 = arith.constant 0 : i32
    %35 = vector.broadcast %c0_i32_11 : i32 to vector<32x64xi32>
    %36 = arith.cmpi sge, %34, %35 : vector<32x64xi32>
    %c1_i32_12 = arith.constant 1 : i32
    %37 = vector.broadcast %c1_i32_12 : i32 to vector<32x64xi32>
    %38 = arith.addi %18, %37 : vector<32x64xi32>
    %c16_i32_13 = arith.constant 16 : i32
    %39 = vector.broadcast %c16_i32_13 : i32 to vector<32x64xi32>
    %40 = arith.cmpi slt, %38, %39 : vector<32x64xi32>
    %41 = arith.andi %36, %40 : vector<32x64xi1>
    %cst_14 = arith.constant 0.000000e+00 : f32
    %42 = vector.broadcast %cst_14 : f32 to vector<1x64xf32>
    %43 = vector.extract_strided_slice %1 {offsets = [1, 0], sizes = [31, 64], strides = [1, 1]} : vector<32x64xf32> to vector<31x64xf32>
    %44 = tpu.concatenate %43, %42 in 0 : vector<31x64xf32>, vector<1x64xf32> -> vector<32x64xf32>
    %cst_15 = arith.constant 0.000000e+00 : f32
    %45 = vector.broadcast %cst_15 : f32 to vector<32x64xf32>
    %46 = arith.select %41, %44, %45 : vector<32x64xi1>, vector<32x64xf32>
    %47 = tpu.concatenate %32, %1, %46 in 1 : vector<32x64xf32>, vector<32x64xf32>, vector<32x64xf32> -> vector<32x192xf32>
    %c0_16 = arith.constant 0 : index
    %c0_17 = arith.constant 0 : index
    %48 = vector.load %arg1[%c0_16, %c0_17] : memref<192x128xf32, #tpu.memory_space<vmem>>, vector<192x128xf32>
    %cst_18 = arith.constant dense<0.000000e+00> : vector<32x128xf32>
    %49 = tpu.matmul %47, %48, %cst_18 {dimension_numbers = #tpu.dot_dimension_numbers<[1], [0], [0], [1], [0, 0, 1, 1], [], []>} : vector<32x192xf32>, vector<192x128xf32>, vector<32x128xf32> -> vector<32x128xf32>
    %c0_19 = arith.constant 0 : index
    %c0_20 = arith.constant 0 : index
    %50 = vector.load %arg4[%c0_19, %c0_20] : memref<2x128xf32, #tpu.memory_space<vmem>>, vector<2x128xf32>
    %cst_21 = arith.constant dense<0.000000e+00> : vector<128xf32>
    %51 = vector.multi_reduction <add>, %49, %cst_21 [0] : vector<32x128xf32> to vector<128xf32>
    %52 = vector.shape_cast %51 : vector<128xf32> to vector<1x128xf32>
    %53 = arith.mulf %49, %49 : vector<32x128xf32>
    %cst_22 = arith.constant dense<0.000000e+00> : vector<128xf32>
    %54 = vector.multi_reduction <add>, %53, %cst_22 [0] : vector<32x128xf32> to vector<128xf32>
    %55 = vector.shape_cast %54 : vector<128xf32> to vector<1x128xf32>
    %56 = tpu.concatenate %52, %55 in 0 : vector<1x128xf32>, vector<1x128xf32> -> vector<2x128xf32>
    %cst_23 = arith.constant dense<0.000000e+00> : vector<2x128xf32>
    %57 = tpu.matmul %56, %0, %cst_23 {dimension_numbers = #tpu.dot_dimension_numbers<[1], [0], [0], [1], [0, 0, 1, 1], [], []>} : vector<2x128xf32>, vector<128x128xf32>, vector<2x128xf32> -> vector<2x128xf32>
    %58 = vector.extract_strided_slice %57 {offsets = [0, 0], sizes = [1, 128], strides = [1, 1]} : vector<2x128xf32> to vector<1x128xf32>
    %cst_24 = arith.constant 0.001953125 : f32
    %59 = vector.broadcast %cst_24 : f32 to vector<1x128xf32>
    %60 = arith.mulf %58, %59 : vector<1x128xf32>
    %61 = vector.extract_strided_slice %57 {offsets = [1, 0], sizes = [1, 128], strides = [1, 1]} : vector<2x128xf32> to vector<1x128xf32>
    %cst_25 = arith.constant 0.001953125 : f32
    %62 = vector.broadcast %cst_25 : f32 to vector<1x128xf32>
    %63 = arith.mulf %61, %62 : vector<1x128xf32>
    %64 = arith.mulf %60, %60 : vector<1x128xf32>
    %65 = arith.subf %63, %64 : vector<1x128xf32>
    %66 = vector.extract_strided_slice %50 {offsets = [0, 0], sizes = [1, 128], strides = [1, 1]} : vector<2x128xf32> to vector<1x128xf32>
    %cst_26 = arith.constant 9.99999974E-6 : f32
    %67 = vector.broadcast %cst_26 : f32 to vector<1x128xf32>
    %68 = arith.addf %65, %67 : vector<1x128xf32>
    %69 = math.rsqrt %68 : vector<1x128xf32>
    %70 = arith.mulf %66, %69 : vector<1x128xf32>
    %71 = vector.extract_strided_slice %50 {offsets = [1, 0], sizes = [1, 128], strides = [1, 1]} : vector<2x128xf32> to vector<1x128xf32>
    %72 = arith.mulf %60, %70 : vector<1x128xf32>
    %73 = arith.subf %71, %72 : vector<1x128xf32>
    %74 = vector.broadcast %70 : vector<1x128xf32> to vector<32x128xf32>
    %75 = arith.mulf %49, %74 : vector<32x128xf32>
    %76 = vector.broadcast %73 : vector<1x128xf32> to vector<32x128xf32>
    %77 = arith.addf %75, %76 : vector<32x128xf32>
    %cst_27 = arith.constant 0.000000e+00 : f32
    %78 = vector.broadcast %cst_27 : f32 to vector<32x128xf32>
    %79 = arith.maximumf %77, %78 : vector<32x128xf32>
    %80 = tpu.iota {dimensions = array<i32: 0>} : vector<32x128xi32>
    %c16_i32_28 = arith.constant 16 : i32
    %c0_i32_29 = arith.constant 0 : i32
    %81 = arith.cmpi eq, %c16_i32_28, %c0_i32_29 : i32
    %c1_i32_30 = arith.constant 1 : i32
    %82 = arith.select %81, %c1_i32_30, %c16_i32_28 : i32
    %83 = vector.broadcast %82 : i32 to vector<32x128xi32>
    %84 = arith.remsi %80, %83 : vector<32x128xi32>
    %c0_i32_31 = arith.constant 0 : i32
    %85 = vector.broadcast %c0_i32_31 : i32 to vector<32x128xi32>
    %86 = arith.cmpi ne, %84, %85 : vector<32x128xi32>
    %c0_i32_32 = arith.constant 0 : i32
    %87 = vector.broadcast %c0_i32_32 : i32 to vector<32x128xi32>
    %88 = arith.cmpi slt, %84, %87 : vector<32x128xi32>
    %c0_i32_33 = arith.constant 0 : i32
    %89 = arith.cmpi slt, %82, %c0_i32_33 : i32
    %90 = vector.broadcast %89 : i1 to vector<32x128xi1>
    %91 = vector.broadcast %90 : vector<32x128xi1> to vector<32x128xi1>
    %92 = arith.xori %88, %91 : vector<32x128xi1>
    %93 = arith.andi %92, %86 : vector<32x128xi1>
    %94 = vector.broadcast %82 : i32 to vector<32x128xi32>
    %95 = arith.addi %84, %94 : vector<32x128xi32>
    %96 = arith.select %93, %95, %84 : vector<32x128xi1>, vector<32x128xi32>
    %c-1_i32_34 = arith.constant -1 : i32
    %97 = vector.broadcast %c-1_i32_34 : i32 to vector<32x128xi32>
    %98 = arith.addi %96, %97 : vector<32x128xi32>
    %c0_i32_35 = arith.constant 0 : i32
    %99 = vector.broadcast %c0_i32_35 : i32 to vector<32x128xi32>
    %100 = arith.cmpi sge, %98, %99 : vector<32x128xi32>
    %c-1_i32_36 = arith.constant -1 : i32
    %101 = vector.broadcast %c-1_i32_36 : i32 to vector<32x128xi32>
    %102 = arith.addi %96, %101 : vector<32x128xi32>
    %c16_i32_37 = arith.constant 16 : i32
    %103 = vector.broadcast %c16_i32_37 : i32 to vector<32x128xi32>
    %104 = arith.cmpi slt, %102, %103 : vector<32x128xi32>
    %105 = arith.andi %100, %104 : vector<32x128xi1>
    %cst_38 = arith.constant 0.000000e+00 : f32
    %106 = vector.broadcast %cst_38 : f32 to vector<1x128xf32>
    %107 = vector.extract_strided_slice %79 {offsets = [0, 0], sizes = [31, 128], strides = [1, 1]} : vector<32x128xf32> to vector<31x128xf32>
    %108 = tpu.concatenate %106, %107 in 0 : vector<1x128xf32>, vector<31x128xf32> -> vector<32x128xf32>
    %cst_39 = arith.constant 0.000000e+00 : f32
    %109 = vector.broadcast %cst_39 : f32 to vector<32x128xf32>
    %110 = arith.select %105, %108, %109 : vector<32x128xi1>, vector<32x128xf32>
    %c1_i32_40 = arith.constant 1 : i32
    %111 = vector.broadcast %c1_i32_40 : i32 to vector<32x128xi32>
    %112 = arith.addi %96, %111 : vector<32x128xi32>
    %c0_i32_41 = arith.constant 0 : i32
    %113 = vector.broadcast %c0_i32_41 : i32 to vector<32x128xi32>
    %114 = arith.cmpi sge, %112, %113 : vector<32x128xi32>
    %c1_i32_42 = arith.constant 1 : i32
    %115 = vector.broadcast %c1_i32_42 : i32 to vector<32x128xi32>
    %116 = arith.addi %96, %115 : vector<32x128xi32>
    %c16_i32_43 = arith.constant 16 : i32
    %117 = vector.broadcast %c16_i32_43 : i32 to vector<32x128xi32>
    %118 = arith.cmpi slt, %116, %117 : vector<32x128xi32>
    %119 = arith.andi %114, %118 : vector<32x128xi1>
    %cst_44 = arith.constant 0.000000e+00 : f32
    %120 = vector.broadcast %cst_44 : f32 to vector<1x128xf32>
    %121 = vector.extract_strided_slice %79 {offsets = [1, 0], sizes = [31, 128], strides = [1, 1]} : vector<32x128xf32> to vector<31x128xf32>
    %122 = tpu.concatenate %121, %120 in 0 : vector<31x128xf32>, vector<1x128xf32> -> vector<32x128xf32>
    %cst_45 = arith.constant 0.000000e+00 : f32
    %123 = vector.broadcast %cst_45 : f32 to vector<32x128xf32>
    %124 = arith.select %119, %122, %123 : vector<32x128xi1>, vector<32x128xf32>
    %125 = tpu.concatenate %110, %79, %124 in 1 : vector<32x128xf32>, vector<32x128xf32>, vector<32x128xf32> -> vector<32x384xf32>
    %c0_46 = arith.constant 0 : index
    %c0_47 = arith.constant 0 : index
    %126 = vector.load %arg2[%c0_46, %c0_47] : memref<384x128xf32, #tpu.memory_space<vmem>>, vector<384x128xf32>
    %cst_48 = arith.constant dense<0.000000e+00> : vector<32x128xf32>
    %127 = tpu.matmul %125, %126, %cst_48 {dimension_numbers = #tpu.dot_dimension_numbers<[1], [0], [0], [1], [0, 0, 1, 1], [], []>} : vector<32x384xf32>, vector<384x128xf32>, vector<32x128xf32> -> vector<32x128xf32>
    %c0_49 = arith.constant 0 : index
    %c0_50 = arith.constant 0 : index
    %128 = vector.load %arg5[%c0_49, %c0_50] : memref<2x128xf32, #tpu.memory_space<vmem>>, vector<2x128xf32>
    %cst_51 = arith.constant dense<0.000000e+00> : vector<128xf32>
    %129 = vector.multi_reduction <add>, %127, %cst_51 [0] : vector<32x128xf32> to vector<128xf32>
    %130 = vector.shape_cast %129 : vector<128xf32> to vector<1x128xf32>
    %131 = arith.mulf %127, %127 : vector<32x128xf32>
    %cst_52 = arith.constant dense<0.000000e+00> : vector<128xf32>
    %132 = vector.multi_reduction <add>, %131, %cst_52 [0] : vector<32x128xf32> to vector<128xf32>
    %133 = vector.shape_cast %132 : vector<128xf32> to vector<1x128xf32>
    %134 = tpu.concatenate %130, %133 in 0 : vector<1x128xf32>, vector<1x128xf32> -> vector<2x128xf32>
    %cst_53 = arith.constant dense<0.000000e+00> : vector<2x128xf32>
    %135 = tpu.matmul %134, %0, %cst_53 {dimension_numbers = #tpu.dot_dimension_numbers<[1], [0], [0], [1], [0, 0, 1, 1], [], []>} : vector<2x128xf32>, vector<128x128xf32>, vector<2x128xf32> -> vector<2x128xf32>
    %136 = vector.extract_strided_slice %135 {offsets = [0, 0], sizes = [1, 128], strides = [1, 1]} : vector<2x128xf32> to vector<1x128xf32>
    %cst_54 = arith.constant 0.001953125 : f32
    %137 = vector.broadcast %cst_54 : f32 to vector<1x128xf32>
    %138 = arith.mulf %136, %137 : vector<1x128xf32>
    %139 = vector.extract_strided_slice %135 {offsets = [1, 0], sizes = [1, 128], strides = [1, 1]} : vector<2x128xf32> to vector<1x128xf32>
    %cst_55 = arith.constant 0.001953125 : f32
    %140 = vector.broadcast %cst_55 : f32 to vector<1x128xf32>
    %141 = arith.mulf %139, %140 : vector<1x128xf32>
    %142 = arith.mulf %138, %138 : vector<1x128xf32>
    %143 = arith.subf %141, %142 : vector<1x128xf32>
    %144 = vector.extract_strided_slice %128 {offsets = [0, 0], sizes = [1, 128], strides = [1, 1]} : vector<2x128xf32> to vector<1x128xf32>
    %cst_56 = arith.constant 9.99999974E-6 : f32
    %145 = vector.broadcast %cst_56 : f32 to vector<1x128xf32>
    %146 = arith.addf %143, %145 : vector<1x128xf32>
    %147 = math.rsqrt %146 : vector<1x128xf32>
    %148 = arith.mulf %144, %147 : vector<1x128xf32>
    %149 = vector.extract_strided_slice %128 {offsets = [1, 0], sizes = [1, 128], strides = [1, 1]} : vector<2x128xf32> to vector<1x128xf32>
    %150 = arith.mulf %138, %148 : vector<1x128xf32>
    %151 = arith.subf %149, %150 : vector<1x128xf32>
    %152 = vector.broadcast %148 : vector<1x128xf32> to vector<32x128xf32>
    %153 = arith.mulf %127, %152 : vector<32x128xf32>
    %154 = vector.broadcast %151 : vector<1x128xf32> to vector<32x128xf32>
    %155 = arith.addf %153, %154 : vector<32x128xf32>
    %cst_57 = arith.constant 0.000000e+00 : f32
    %156 = vector.broadcast %cst_57 : f32 to vector<32x128xf32>
    %157 = arith.maximumf %155, %156 : vector<32x128xf32>
    %c0_58 = arith.constant 0 : index
    %c0_59 = arith.constant 0 : index
    %158 = vector.load %arg6[%c0_58, %c0_59] : memref<32x128xf32, #tpu.memory_space<vmem>>, vector<32x128xf32>
    tpu.vector_store %arg6[%c0_58, %c0_59], %157 {strides = array<i32>} : memref<32x128xf32, #tpu.memory_space<vmem>>, vector<32x128xf32>,
    return
  }
}

</mosaic_0001>

<llo_original>
// kernel: tpu_custom_call.1
$region0: #{tpu_custom_call.1}
  #allocation0 [shape = 'u32[]', space=smem, size = 0x4, offset = 0x4, fixed_abs, tag = 'smem constant byte address 0x4 - core index']
  #allocation1 [shape = 'u32[144,128]{1,0:T(1,128)}', space=vmem, size = 0x12000, scoped, tag = 'internal scratch']
  %s0 = inlined_call_operand.hbm [shape: f32[32,64], index: 0, kind: input, shape index: {}]
  %s1 = inlined_call_operand.hbm [shape: f32[192,128], index: 1, kind: input, shape index: {}]
  %s2 = inlined_call_operand.hbm [shape: f32[384,128], index: 2, kind: input, shape index: {}]
  %s3 = inlined_call_operand.hbm [shape: f32[128,128], index: 3, kind: input, shape index: {}]
  %s4 = inlined_call_operand.vmem [shape: f32[2,128], index: 4, kind: input, shape index: {}]
  %s5 = inlined_call_operand.vmem [shape: f32[2,128], index: 5, kind: input, shape index: {}]
  %s6 = inlined_call_operand.hbm [shape: f32[32,128], index: 6, kind: output, shape index: {}]
  %s7 = sld [smem:[#allocation0]]
  $region50: #{tpu_custom_call.1} parent=0
    _
  %s9 = ssub.s32 1, %s7
  %s10 = scalar_select 0, %s9, %s7
  $region1: #{tpu_custom_call.1} parent=0
    #allocation2 [shape = 'u8[16384]{0}', space=vmem, size = 0x4000, scoped, tag = 'input window, operand 0, single buffered']
    #allocation3 [shape = 's32[1]{0}', space=sflag, size = 0x4, scoped, tag = 'scoped memory for tpu_custom_call.1']
    #allocation4 [shape = 's32[1]{0}', space=sflag, size = 0x4, scoped, tag = 'scoped memory for tpu_custom_call.1']
    #allocation5 [shape = 'u8[98304]{0}', space=vmem, size = 0x18000, scoped, tag = 'input window, operand 1, single buffered']
    #allocation6 [shape = 's32[1]{0}', space=sflag, size = 0x4, scoped, tag = 'scoped memory for tpu_custom_call.1']
    #allocation7 [shape = 'u8[196608]{0}', space=vmem, size = 0x30000, scoped, tag = 'input window, operand 2, single buffered']
    #allocation8 [shape = 'u8[65536]{0}', space=vmem, size = 0x10000, scoped, tag = 'input window, operand 3, single buffered']
    #allocation9 [shape = 's32[1]{0}', space=sflag, size = 0x4, scoped, tag = 'scoped memory for tpu_custom_call.1']
    #allocation10 [shape = 'u8[16384]{0}', space=vmem, size = 0x4000, scoped, tag = 'output window, operand 0, single buffered']
    %11 = vsyncpa [#allocation3], 0
    %12 = vsyncpa [#allocation6], 0
    %13 = vsyncpa [#allocation9], 0
    %14 = vsyncpa [#allocation4], 0
    // Predicated region
    $region2: #{tpu_custom_call.1} parent=1 // pred_check
      _
    $region3: #{tpu_custom_call.1} parent=1 // pred_check_branch
      %16 = sbr.rel (0) target = $region5
    $region4: #{tpu_custom_call.1} parent=1 // pred_region
      %s18 = ssub.s32 512, 512
      %19 = vsyncadd [#allocation3], %s18
      %s20 = sshll.u32 [#allocation2], 4
      %s21 = int_to_ptr.vmem [resolvable:$true] %s20
      %26 = dma.hbm_to_vmem [thread:$0]  %s0, 512, %s21, [#allocation3], 128, 128, 8
    $region5: #{tpu_custom_call.1} parent=1 // pred_fallthru
      _
    // Predicated region
    $region6: #{tpu_custom_call.1} parent=1 // pred_check
      _
    $region7: #{tpu_custom_call.1} parent=1 // pred_check_branch
      %28 = sbr.rel (0) target = $region9
    $region8: #{tpu_custom_call.1} parent=1 // pred_region
      %s30 = ssub.s32 3072, 3072
      %31 = vsyncadd [#allocation6], %s30
      %s32 = sshll.u32 [#allocation5], 4
      %s33 = int_to_ptr.vmem [resolvable:$true] %s32
      %38 = dma.hbm_to_vmem [thread:$0]  %s1, 3072, %s33, [#allocation6], 128, 128, 8
    $region9: #{tpu_custom_call.1} parent=1 // pred_fallthru
      _
    // Predicated region
    $region10: #{tpu_custom_call.1} parent=1 // pred_check
      _
    $region11: #{tpu_custom_call.1} parent=1 // pred_check_branch
      %40 = sbr.rel (0) target = $region13
    $region12: #{tpu_custom_call.1} parent=1 // pred_region
      %s42 = ssub.s32 6144, 6144
      %43 = vsyncadd [#allocation6], %s42
      %s44 = sshll.u32 [#allocation7], 4
      %s45 = int_to_ptr.vmem [resolvable:$true] %s44
      %50 = dma.hbm_to_vmem [thread:$0]  %s2, 6144, %s45, [#allocation6], 128, 128, 8
    $region13: #{tpu_custom_call.1} parent=1 // pred_fallthru
      _
    // Predicated region
    $region14: #{tpu_custom_call.1} parent=1 // pred_check
      _
    $region15: #{tpu_custom_call.1} parent=1 // pred_check_branch
      %52 = sbr.rel (0) target = $region17
    $region16: #{tpu_custom_call.1} parent=1 // pred_region
      %s54 = ssub.s32 2048, 2048
      %55 = vsyncadd [#allocation9], %s54
      %s56 = sshll.u32 [#allocation8], 4
      %s57 = int_to_ptr.vmem [resolvable:$true] %s56
      %62 = dma.hbm_to_vmem [thread:$0]  %s3, 2048, %s57, [#allocation9], 128, 128, 8
    $region17: #{tpu_custom_call.1} parent=1 // pred_fallthru
      _
    // Predicated region
    $region18: #{tpu_custom_call.1} parent=1 // pred_check
      _
    $region19: #{tpu_custom_call.1} parent=1 // pred_check_branch
      %64 = sbr.rel (0) target = $region21
    $region20: #{tpu_custom_call.1} parent=1 // pred_region
      _
    $region21: #{tpu_custom_call.1} parent=1 // pred_fallthru
      _
    // Predicated region
    $region22: #{tpu_custom_call.1} parent=1 // pred_check
      _
    $region23: #{tpu_custom_call.1} parent=1 // pred_check_branch
      %66 = sbr.rel (0) target = $region25
    $region24: #{tpu_custom_call.1} parent=1 // pred_region
      _
    $region25: #{tpu_custom_call.1} parent=1 // pred_fallthru
      _
    // Predicated region
    $region26: #{tpu_custom_call.1} parent=1 // pred_check
      _
    $region27: #{tpu_custom_call.1} parent=1 // pred_check_branch
      %68 = sbr.rel (0) target = $region29
    $region28: #{tpu_custom_call.1} parent=1 // pred_region
      %69 = dma.done [#allocation3], 512
    $region29: #{tpu_custom_call.1} parent=1 // pred_fallthru
      _
    // Predicated region
    $region30: #{tpu_custom_call.1} parent=1 // pred_check
      _
    $region31: #{tpu_custom_call.1} parent=1 // pred_check_branch
      %71 = sbr.rel (0) target = $region33
    $region32: #{tpu_custom_call.1} parent=1 // pred_region
      %72 = dma.done [#allocation6], 3072
    $region33: #{tpu_custom_call.1} parent=1 // pred_fallthru
      _
    // Predicated region
    $region34: #{tpu_custom_call.1} parent=1 // pred_check
      _
    $region35: #{tpu_custom_call.1} parent=1 // pred_check_branch
      %74 = sbr.rel (0) target = $region37
    $region36: #{tpu_custom_call.1} parent=1 // pred_region
      %75 = dma.done [#allocation6], 6144
    $region37: #{tpu_custom_call.1} parent=1 // pred_fallthru
      _
    // Predicated region
    $region38: #{tpu_custom_call.1} parent=1 // pred_check
      _
    $region39: #{tpu_custom_call.1} parent=1 // pred_check_branch
      %77 = sbr.rel (0) target = $region41
    $region40: #{tpu_custom_call.1} parent=1 // pred_region
      %78 = dma.done [#allocation9], 2048
    $region41: #{tpu_custom_call.1} parent=1 // pred_fallthru
      _
    %v79 = vld [vmem:[#allocation8] sm:$0xff]
    %v80 = vld [vmem:[#allocation8 + $0x8] sm:$0xff]
    %v81 = vld [vmem:[#allocation8 + $0x10] sm:$0xff]
    %v82 = vld [vmem:[#allocation8 + $0x18] sm:$0xff]
    %v83 = vld [vmem:[#allocation8 + $0x20] sm:$0xff]
    %v84 = vld [vmem:[#allocation8 + $0x28] sm:$0xff]
    %v85 = vld [vmem:[#allocation8 + $0x30] sm:$0xff]
    %v86 = vld [vmem:[#allocation8 + $0x38] sm:$0xff]
    %v87 = vld [vmem:[#allocation8 + $0x40] sm:$0xff]
    %v88 = vld [vmem:[#allocation8 + $0x48] sm:$0xff]
    %v89 = vld [vmem:[#allocation8 + $0x50] sm:$0xff]
    %v90 = vld [vmem:[#allocation8 + $0x58] sm:$0xff]
    %v91 = vld [vmem:[#allocation8 + $0x60] sm:$0xff]
    %v92 = vld [vmem:[#allocation8 + $0x68] sm:$0xff]
    %v93 = vld [vmem:[#allocation8 + $0x70] sm:$0xff]
    %v94 = vld [vmem:[#allocation8 + $0x78] sm:$0xff]
    %v95 = vld [vmem:[#allocation2] sm:$0xff]
    %v96 = vld [vmem:[#allocation2 + $0x8] sm:$0xff]
    %v97 = vld [vmem:[#allocation2 + $0x10] sm:$0xff]
    %v98 = vld [vmem:[#allocation2 + $0x18] sm:$0xff]
    %v99 = vlaneseq
    %v100 = vshrl.u32 %v99, 7
    %v101 = vadd.s32 %v100, 8
    %v102 = vadd.s32 %v100, 16
    %v103 = vadd.s32 %v100, 24
    %vm104 = vcmp.lt.s32.totalorder %v100, 0
    %v105 = vsub.s32 0, %v100
    %v106 = vsel %vm104, %v105, %v100
    %v107 = vshrl.u32 %v106, 4
    %v108 = vand.u32 %v106, 15
    %v109 = vsub.s32 0, %v108
    %v110 = vsel %vm104, %v109, %v108
    %vm111 = vcmp.lt.s32.totalorder %v101, 0
    %v112 = vsub.s32 0, %v101
    %v113 = vsel %vm111, %v112, %v101
    %v114 = vshrl.u32 %v113, 4
    %v115 = vand.u32 %v113, 15
    %v116 = vsub.s32 0, %v115
    %v117 = vsel %vm111, %v116, %v115
    %vm118 = vcmp.lt.s32.totalorder %v102, 0
    %v119 = vsub.s32 0, %v102
    %v120 = vsel %vm118, %v119, %v102
    %v121 = vshrl.u32 %v120, 4
    %v122 = vand.u32 %v120, 15
    %v123 = vsub.s32 0, %v122
    %v124 = vsel %vm118, %v123, %v122
    %vm125 = vcmp.lt.s32.totalorder %v103, 0
    %v126 = vsub.s32 0, %v103
    %v127 = vsel %vm125, %v126, %v103
    %v128 = vshrl.u32 %v127, 4
    %v129 = vand.u32 %v127, 15
    %v130 = vsub.s32 0, %v129
    %v131 = vsel %vm125, %v130, %v129
    %vm132 = vcmp.ne.s32.totalorder %v110, 0
    %vm133 = vcmp.ne.s32.totalorder %v117, 0
    %vm134 = vcmp.ne.s32.totalorder %v124, 0
    %vm135 = vcmp.ne.s32.totalorder %v131, 0
    %vm136 = vcmp.lt.s32.totalorder %v110, 0
    %vm137 = vcmp.lt.s32.totalorder %v117, 0
    %vm138 = vcmp.lt.s32.totalorder %v124, 0
    %vm139 = vcmp.lt.s32.totalorder %v131, 0
    %vm140 = vmand %vm136, %vm132
    %vm141 = vmand %vm137, %vm133
    %vm142 = vmand %vm138, %vm134
    %vm143 = vmand %vm139, %vm135
    %v144 = vadd.s32 %v110, 16
    %v145 = vadd.s32 %v117, 16
    %v146 = vadd.s32 %v124, 16
    %v147 = vadd.s32 %v131, 16
    %v148 = vsel %vm140, %v144, %v110
    %v149 = vsel %vm141, %v145, %v117
    %v150 = vsel %vm142, %v146, %v124
    %v151 = vsel %vm143, %v147, %v131
    %v152 = vadd.s32 %v148, 4294967295
    %v153 = vadd.s32 %v149, 4294967295
    %v154 = vadd.s32 %v150, 4294967295
    %v155 = vadd.s32 %v151, 4294967295
    %vm156 = vcmp.ge.s32.totalorder %v152, 0
    %vm157 = vcmp.ge.s32.totalorder %v153, 0
    %vm158 = vcmp.ge.s32.totalorder %v154, 0
    %vm159 = vcmp.ge.s32.totalorder %v155, 0
    %vm160 = vcmp.lt.s32.totalorder %v152, 16
    %vm161 = vcmp.lt.s32.totalorder %v153, 16
    %vm162 = vcmp.lt.s32.totalorder %v154, 16
    %vm163 = vcmp.lt.s32.totalorder %v155, 16
    %vm164 = vmand %vm156, %vm160
    %vm165 = vmand %vm157, %vm161
    %vm166 = vmand %vm158, %vm162
    %vm167 = vmand %vm159, %vm163
    %vm172 = vcmask 1040384
    %v173 = vrot.slane %v95, 7
    %v174 = vrot.slane %v96, 7
    %v175 = vsel %vm172, %v173, %v174
    %v176 = vrot.slane %v97, 7
    %v177 = vsel %vm172, %v174, %v176
    %v178 = vrot.slane %v98, 7
    %v179 = vsel %vm172, %v176, %v178
    %v184 = vsel %vm172, 0.0, %v173
    %v185 = vsel %vm164, %v184, 0.0
    %v186 = vsel %vm165, %v175, 0.0
    %v187 = vsel %vm166, %v177, 0.0
    %v188 = vsel %vm167, %v179, 0.0
    %v189 = vadd.s32 %v148, 1
    %v190 = vadd.s32 %v149, 1
    %v191 = vadd.s32 %v150, 1
    %v192 = vadd.s32 %v151, 1
    %vm193 = vcmp.ge.s32.totalorder %v189, 0
    %vm194 = vcmp.ge.s32.totalorder %v190, 0
    %vm195 = vcmp.ge.s32.totalorder %v191, 0
    %vm196 = vcmp.ge.s32.totalorder %v192, 0
    %vm197 = vcmp.lt.s32.totalorder %v189, 16
    %vm198 = vcmp.lt.s32.totalorder %v190, 16
    %vm199 = vcmp.lt.s32.totalorder %v191, 16
    %vm200 = vcmp.lt.s32.totalorder %v192, 16
    %vm201 = vmand %vm193, %vm197
    %vm202 = vmand %vm194, %vm198
    %vm203 = vmand %vm195, %vm199
    %vm204 = vmand %vm196, %vm200
    %vm205 = vcmask 1046528
    %v206 = vrot.slane %v95, 1
    %v207 = vrot.slane %v96, 1
    %v208 = vsel %vm205, %v206, %v207
    %v209 = vrot.slane %v97, 1
    %v210 = vsel %vm205, %v207, %v209
    %v211 = vrot.slane %v98, 1
    %v212 = vsel %vm205, %v209, %v211
    %v217 = vsel %vm205, %v211, 0.0
    %v218 = vsel %vm201, %v208, 0.0
    %v219 = vsel %vm202, %v210, 0.0
    %v220 = vsel %vm203, %v212, 0.0
    %v221 = vsel %vm204, %v217, 0.0
    %222 = vrot.lane.b32.xlu0 %v95, 64
    %v223 = vpop.permute.xlu0 %222
    %224 = vrot.lane.b32.xlu0 %v96, 64
    %v225 = vpop.permute.xlu0 %224
    %226 = vrot.lane.b32.xlu0 %v97, 64
    %v227 = vpop.permute.xlu0 %226
    %228 = vrot.lane.b32.xlu0 %v98, 64
    %v229 = vpop.permute.xlu0 %228
    %vm234 = vcmask 523264
    %v235 = vsel %vm234, %v185, %v223
    %v236 = vsel %vm234, %v186, %v225
    %v237 = vsel %vm234, %v187, %v227
    %v238 = vsel %vm234, %v188, %v229
    %v239 = vld [vmem:[#allocation5] sm:$0xff]
    %v240 = vld [vmem:[#allocation5 + $0x8] sm:$0xff]
    %v241 = vld [vmem:[#allocation5 + $0x10] sm:$0xff]
    %v242 = vld [vmem:[#allocation5 + $0x18] sm:$0xff]
    %v243 = vld [vmem:[#allocation5 + $0x20] sm:$0xff]
    %v244 = vld [vmem:[#allocation5 + $0x28] sm:$0xff]
    %v245 = vld [vmem:[#allocation5 + $0x30] sm:$0xff]
    %v246 = vld [vmem:[#allocation5 + $0x38] sm:$0xff]
    %v247 = vld [vmem:[#allocation5 + $0x40] sm:$0xff]
    %v248 = vld [vmem:[#allocation5 + $0x48] sm:$0xff]
    %v249 = vld [vmem:[#allocation5 + $0x50] sm:$0xff]
    %v250 = vld [vmem:[#allocation5 + $0x58] sm:$0xff]
    %v251 = vld [vmem:[#allocation5 + $0x60] sm:$0xff]
    %v252 = vld [vmem:[#allocation5 + $0x68] sm:$0xff]
    %v253 = vld [vmem:[#allocation5 + $0x70] sm:$0xff]
    %v254 = vld [vmem:[#allocation5 + $0x78] sm:$0xff]
    %v255 = vld [vmem:[#allocation5 + $0x80] sm:$0xff]
    %v256 = vld [vmem:[#allocation5 + $0x88] sm:$0xff]
    %v257 = vld [vmem:[#allocation5 + $0x90] sm:$0xff]
    %v258 = vld [vmem:[#allocation5 + $0x98] sm:$0xff]
    %v259 = vld [vmem:[#allocation5 + $0xa0] sm:$0xff]
    %v260 = vld [vmem:[#allocation5 + $0xa8] sm:$0xff]
    %v261 = vld [vmem:[#allocation5 + $0xb0] sm:$0xff]
    %v262 = vld [vmem:[#allocation5 + $0xb8] sm:$0xff]
    %v264 = vsel %vm234, %v218, 0
    %v267 = vsel %vm234, %v219, 0
    %v270 = vsel %vm234, %v220, 0
    %v273 = vsel %vm234, %v221, 0
    %275 = vmatprep.subr.mxu0 0.0
    %276 = vmatpush1.msra.mxu0 %v239
    %277 = vmatprep.subr.mxu0 0.0
    %278 = vmatpush1.msra.mxu0 %v240
    %279 = vmatprep.subr.mxu0 0.0
    %280 = vmatpush1.msra.mxu0 %v241
    %281 = vmatprep.subr.mxu0 0.0
    %282 = vmatpush1.msra.mxu0 %v242
    %283 = vmatprep.subr.mxu0 0.0
    %284 = vmatpush1.msra.mxu0 %v243
    %285 = vmatprep.subr.mxu0 0.0
    %286 = vmatpush1.msra.mxu0 %v244
    %287 = vmatprep.subr.mxu0 0.0
    %288 = vmatpush1.msra.mxu0 %v245
    %289 = vmatprep.subr.mxu0 0.0
    %290 = vmatpush1.msra.mxu0 %v246
    %291 = vmatprep.subr.mxu0 0.0
    %292 = vmatpush1.msra.mxu0 %v247
    %293 = vmatprep.subr.mxu0 0.0
    %294 = vmatpush1.msra.mxu0 %v248
    %295 = vmatprep.subr.mxu0 0.0
    %296 = vmatpush1.msra.mxu0 %v249
    %297 = vmatprep.subr.mxu0 0.0
    %298 = vmatpush1.msra.mxu0 %v250
    %299 = vmatprep.subr.mxu0 0.0
    %300 = vmatpush1.msra.mxu0 %v251
    %301 = vmatprep.subr.mxu0 0.0
    %302 = vmatpush1.msra.mxu0 %v252
    %303 = vmatprep.subr.mxu0 0.0
    %304 = vmatpush1.msra.mxu0 %v253
    %305 = vmatprep.subr.mxu0 0.0
    %306 = vmatpush1.msra.mxu0 %v254
    %307 = vmatprep.subr.mxu0 0.0
    %308 = vmatpush1.msra.mxu0 %v255
    %309 = vmatprep.subr.mxu0 0.0
    %310 = vmatpush1.msra.mxu0 %v256
    %311 = vmatprep.subr.mxu0 0.0
    %312 = vmatpush1.msra.mxu0 %v257
    %313 = vmatprep.subr.mxu0 0.0
    %314 = vmatpush1.msra.mxu0 %v258
    %315 = vmatprep.subr.mxu0 0.0
    %316 = vmatpush1.msra.mxu0 %v259
    %317 = vmatprep.subr.mxu0 0.0
    %318 = vmatpush1.msra.mxu0 %v260
    %319 = vmatprep.subr.mxu0 0.0
    %320 = vmatpush1.msra.mxu0 %v261
    %321 = vmatprep.subr.mxu0 0.0
    %322 = vmatpush1.msra.mxu0 %v262
    %323 = vmatprep.subr.mxu0 0.0
    %324 = vmatpush1.msra.mxu0 0.0
    %325 = vmatprep.subr.mxu0 0.0
    %326 = vmatpush1.msra.mxu0 0.0
    %327 = vmatprep.subr.mxu0 0.0
    %328 = vmatpush1.msra.mxu0 0.0
    %329 = vmatprep.subr.mxu0 0.0
    %330 = vmatpush1.msra.mxu0 0.0
    %331 = vmatprep.subr.mxu0 0.0
    %332 = vmatpush1.msra.mxu0 0.0
    %333 = vmatprep.subr.mxu0 0.0
    %334 = vmatpush1.msra.mxu0 0.0
    %335 = vmatprep.subr.mxu0 0.0
    %336 = vmatpush1.msra.mxu0 0.0
    %337 = vmatprep.subr.mxu0 0.0
    %338 = vmatpush1.msra.mxu0 0.0
    %339 = vmatprep.mubr.f32.mxu0 %v264
    %340 = vmatmul.mubr.f32.gmra.mrb[0].mxu0 %v235
    %v341 = vpop.f32.mrb[0].mxu0
    %v342 = vadd.f32 0.0, %v341
    %v343 = vpop.f32.mrb[0].mxu0
    %344 = vmatprep.mubr.f32.mxu0 %v267
    %345 = vmatmul.mubr.f32.gmra.mrb[0].mxu0 %v236
    %v346 = vpop.f32.mrb[0].mxu0
    %v347 = vadd.f32 0.0, %v346
    %v348 = vpop.f32.mrb[0].mxu0
    %349 = vmatprep.mubr.f32.mxu0 %v270
    %350 = vmatmul.mubr.f32.gmra.mrb[0].mxu0 %v237
    %v351 = vpop.f32.mrb[0].mxu0
    %v352 = vadd.f32 0.0, %v351
    %v353 = vpop.f32.mrb[0].mxu0
    %354 = vmatprep.mubr.f32.mxu0 %v273
    %355 = vmatmul.mubr.f32.gmra.mrb[0].mxu0 %v238
    %v356 = vpop.f32.mrb[0].mxu0
    %v357 = vadd.f32 0.0, %v356
    %v358 = vpop.f32.mrb[0].mxu0
    %359 = vdwg.mxu0
    %v360 = vld [vmem:[%s4] sm:$0x3]
    %v361 = vadd.f32 %v342, %v347
    %v362 = vadd.f32 %v361, %v352
    %v363 = vadd.f32 %v362, %v357
    %v364 = vrot.slane %v363, 4
    %v365 = vadd.f32 %v363, %v364
    %v366 = vrot.slane %v365, 2
    %v367 = vadd.f32 %v365, %v366
    %v368 = vrot.slane %v367, 1
    %v369 = vadd.f32 %v367, %v368
    %v370 = vmul.f32 %v342, %v342
    %v371 = vmul.f32 %v347, %v347
    %v372 = vmul.f32 %v352, %v352
    %v373 = vmul.f32 %v357, %v357
    %v374 = vadd.f32 %v370, %v371
    %v375 = vadd.f32 %v374, %v372
    %v376 = vadd.f32 %v375, %v373
    %v377 = vrot.slane %v376, 4
    %v378 = vadd.f32 %v376, %v377
    %v379 = vrot.slane %v378, 2
    %v380 = vadd.f32 %v378, %v379
    %v381 = vrot.slane %v380, 1
    %v382 = vadd.f32 %v380, %v381
    %v383 = vsel %vm172, %v369, %v382
    %384 = vmatprep.subr.mxu0 0.0
    %385 = vmatpush1.msra.mxu0 %v79
    %386 = vmatprep.subr.mxu0 0.0
    %387 = vmatpush1.msra.mxu0 %v80
    %388 = vmatprep.subr.mxu0 0.0
    %389 = vmatpush1.msra.mxu0 %v81
    %390 = vmatprep.subr.mxu0 0.0
    %391 = vmatpush1.msra.mxu0 %v82
    %392 = vmatprep.subr.mxu0 0.0
    %393 = vmatpush1.msra.mxu0 %v83
    %394 = vmatprep.subr.mxu0 0.0
    %395 = vmatpush1.msra.mxu0 %v84
    %396 = vmatprep.subr.mxu0 0.0
    %397 = vmatpush1.msra.mxu0 %v85
    %398 = vmatprep.subr.mxu0 0.0
    %399 = vmatpush1.msra.mxu0 %v86
    %400 = vmatprep.subr.mxu0 0.0
    %401 = vmatpush1.msra.mxu0 %v87
    %402 = vmatprep.subr.mxu0 0.0
    %403 = vmatpush1.msra.mxu0 %v88
    %404 = vmatprep.subr.mxu0 0.0
    %405 = vmatpush1.msra.mxu0 %v89
    %406 = vmatprep.subr.mxu0 0.0
    %407 = vmatpush1.msra.mxu0 %v90
    %408 = vmatprep.subr.mxu0 0.0
    %409 = vmatpush1.msra.mxu0 %v91
    %410 = vmatprep.subr.mxu0 0.0
    %411 = vmatpush1.msra.mxu0 %v92
    %412 = vmatprep.subr.mxu0 0.0
    %413 = vmatpush1.msra.mxu0 %v93
    %414 = vmatprep.subr.mxu0 0.0
    %415 = vmatpush1.msra.mxu0 %v94
    %416 = vmatprep.subr.mxu0 0.0
    %417 = vmatpush1.msra.mxu0 0.0
    %418 = vmatprep.subr.mxu0 0.0
    %419 = vmatpush1.msra.mxu0 0.0
    %420 = vmatprep.subr.mxu0 0.0
    %421 = vmatpush1.msra.mxu0 0.0
    %422 = vmatprep.subr.mxu0 0.0
    %423 = vmatpush1.msra.mxu0 0.0
    %424 = vmatprep.subr.mxu0 0.0
    %425 = vmatpush1.msra.mxu0 0.0
    %426 = vmatprep.subr.mxu0 0.0
    %427 = vmatpush1.msra.mxu0 0.0
    %428 = vmatprep.subr.mxu0 0.0
    %429 = vmatpush1.msra.mxu0 0.0
    %430 = vmatprep.subr.mxu0 0.0
    %431 = vmatpush1.msra.mxu0 0.0
    %432 = vmatprep.subr.mxu0 0.0
    %433 = vmatpush1.msra.mxu0 0.0
    %434 = vmatprep.subr.mxu0 0.0
    %435 = vmatpush1.msra.mxu0 0.0
    %436 = vmatprep.subr.mxu0 0.0
    %437 = vmatpush1.msra.mxu0 0.0
    %438 = vmatprep.subr.mxu0 0.0
    %439 = vmatpush1.msra.mxu0 0.0
    %440 = vmatprep.subr.mxu0 0.0
    %441 = vmatpush1.msra.mxu0 0.0
    %442 = vmatprep.subr.mxu0 0.0
    %443 = vmatpush1.msra.mxu0 0.0
    %444 = vmatprep.subr.mxu0 0.0
    %445 = vmatpush1.msra.mxu0 0.0
    %446 = vmatprep.subr.mxu0 0.0
    %447 = vmatpush1.msra.mxu0 0.0
    %448 = vmatprep.mubr.f32.mxu0 0.0
    %449 = vmatmul.mubr.f32.gmra.mrb[0].mxu0 %v383
    %v450 = vpop.f32.mrb[0].mxu0
    %v451 = vadd.f32 0.0, %v450
    %v452 = vpop.f32.mrb[0].mxu0
    %453 = vdwg.mxu0
    %v454 = vmul.f32 %v451, 0.001953125
    %v455 = vmul.f32 %v454, %v454
    %v457 = vrot.slane %v455, 7
    %v459 = vsub.f32 %v454, %v457
    %v460 = vadd.f32 %v459, 1e-05
    %v461 = vrsqrt.pop %v460
    %v463 = vrot.slane %v461, 1
    %v465 = vmul.f32 %v360, %v463
    %v466 = vmul.f32 %v454, %v465
    %v468 = vrot.slane %v466, 7
    %v470 = vsub.f32 %v360, %v468
    %v471 = vlaneseq
    %v472 = vshrl.u32 %v471, 7
    %v473 = vsub.s32 0, %v472
    %v474 = vrot.slane %v465, %v473
    %v475 = vmul.f32 %v342, %v474
    %v476 = vmul.f32 %v347, %v474
    %v477 = vmul.f32 %v352, %v474
    %v478 = vmul.f32 %v357, %v474
    %v479 = vlaneseq
    %v480 = vshrl.u32 %v479, 7
    %v481 = vsub.s32 1, %v480
    %v482 = vrot.slane %v470, %v481
    %v483 = vadd.f32 %v475, %v482
    %v484 = vadd.f32 %v476, %v482
    %v485 = vadd.f32 %v477, %v482
    %v486 = vadd.f32 %v478, %v482
    %v487 = vmax.f32 %v483, 0.0
    %v488 = vmax.f32 %v484, 0.0
    %v489 = vmax.f32 %v485, 0.0
    %v490 = vmax.f32 %v486, 0.0
    %v495 = vrot.slane %v487, 7
    %v496 = vrot.slane %v488, 7
    %v497 = vsel %vm172, %v495, %v496
    %v498 = vrot.slane %v489, 7
    %v499 = vsel %vm172, %v496, %v498
    %v500 = vrot.slane %v490, 7
    %v501 = vsel %vm172, %v498, %v500
    %v506 = vsel %vm172, 0.0, %v495
    %v507 = vsel %vm164, %v506, 0.0
    %v508 = vsel %vm165, %v497, 0.0
    %v509 = vsel %vm166, %v499, 0.0
    %v510 = vsel %vm167, %v501, 0.0
    %v511 = vrot.slane %v487, 1
    %v512 = vrot.slane %v488, 1
    %v513 = vsel %vm205, %v511, %v512
    %v514 = vrot.slane %v489, 1
    %v515 = vsel %vm205, %v512, %v514
    %v516 = vrot.slane %v490, 1
    %v517 = vsel %vm205, %v514, %v516
    %v522 = vsel %vm205, %v516, 0.0
    %v523 = vsel %vm201, %v513, 0.0
    %v524 = vsel %vm202, %v515, 0.0
    %v525 = vsel %vm203, %v517, 0.0
    %v526 = vsel %vm204, %v522, 0.0
    %v527 = vld [vmem:[#allocation7] sm:$0xff]
    %v528 = vld [vmem:[#allocation7 + $0x8] sm:$0xff]
    %v529 = vld [vmem:[#allocation7 + $0x10] sm:$0xff]
    %v530 = vld [vmem:[#allocation7 + $0x18] sm:$0xff]
    %v531 = vld [vmem:[#allocation7 + $0x20] sm:$0xff]
    %v532 = vld [vmem:[#allocation7 + $0x28] sm:$0xff]
    %v533 = vld [vmem:[#allocation7 + $0x30] sm:$0xff]
    %v534 = vld [vmem:[#allocation7 + $0x38] sm:$0xff]
    %v535 = vld [vmem:[#allocation7 + $0x40] sm:$0xff]
    %v536 = vld [vmem:[#allocation7 + $0x48] sm:$0xff]
    %v537 = vld [vmem:[#allocation7 + $0x50] sm:$0xff]
    %v538 = vld [vmem:[#allocation7 + $0x58] sm:$0xff]
    %v539 = vld [vmem:[#allocation7 + $0x60] sm:$0xff]
    %v540 = vld [vmem:[#allocation7 + $0x68] sm:$0xff]
    %v541 = vld [vmem:[#allocation7 + $0x70] sm:$0xff]
    %v542 = vld [vmem:[#allocation7 + $0x78] sm:$0xff]
    %v543 = vld [vmem:[#allocation7 + $0x80] sm:$0xff]
    %v544 = vld [vmem:[#allocation7 + $0x88] sm:$0xff]
    %v545 = vld [vmem:[#allocation7 + $0x90] sm:$0xff]
    %v546 = vld [vmem:[#allocation7 + $0x98] sm:$0xff]
    %v547 = vld [vmem:[#allocation7 + $0xa0] sm:$0xff]
    %v548 = vld [vmem:[#allocation7 + $0xa8] sm:$0xff]
    %v549 = vld [vmem:[#allocation7 + $0xb0] sm:$0xff]
    %v550 = vld [vmem:[#allocation7 + $0xb8] sm:$0xff]
    %v551 = vld [vmem:[#allocation7 + $0xc0] sm:$0xff]
    %v552 = vld [vmem:[#allocation7 + $0xc8] sm:$0xff]
    %v553 = vld [vmem:[#allocation7 + $0xd0] sm:$0xff]
    %v554 = vld [vmem:[#allocation7 + $0xd8] sm:$0xff]
    %v555 = vld [vmem:[#allocation7 + $0xe0] sm:$0xff]
    %v556 = vld [vmem:[#allocation7 + $0xe8] sm:$0xff]
    %v557 = vld [vmem:[#allocation7 + $0xf0] sm:$0xff]
    %v558 = vld [vmem:[#allocation7 + $0xf8] sm:$0xff]
    %v559 = vld [vmem:[#allocation7 + $0x100] sm:$0xff]
    %v560 = vld [vmem:[#allocation7 + $0x108] sm:$0xff]
    %v561 = vld [vmem:[#allocation7 + $0x110] sm:$0xff]
    %v562 = vld [vmem:[#allocation7 + $0x118] sm:$0xff]
    %v563 = vld [vmem:[#allocation7 + $0x120] sm:$0xff]
    %v564 = vld [vmem:[#allocation7 + $0x128] sm:$0xff]
    %v565 = vld [vmem:[#allocation7 + $0x130] sm:$0xff]
    %v566 = vld [vmem:[#allocation7 + $0x138] sm:$0xff]
    %v567 = vld [vmem:[#allocation7 + $0x140] sm:$0xff]
    %v568 = vld [vmem:[#allocation7 + $0x148] sm:$0xff]
    %v569 = vld [vmem:[#allocation7 + $0x150] sm:$0xff]
    %v570 = vld [vmem:[#allocation7 + $0x158] sm:$0xff]
    %v571 = vld [vmem:[#allocation7 + $0x160] sm:$0xff]
    %v572 = vld [vmem:[#allocation7 + $0x168] sm:$0xff]
    %v573 = vld [vmem:[#allocation7 + $0x170] sm:$0xff]
    %v574 = vld [vmem:[#allocation7 + $0x178] sm:$0xff]
    %575 = vmatprep.subr.mxu0 0.0
    %576 = vmatpush1.msra.mxu0 %v527
    %577 = vmatprep.subr.mxu0 0.0
    %578 = vmatpush1.msra.mxu0 %v528
    %579 = vmatprep.subr.mxu0 0.0
    %580 = vmatpush1.msra.mxu0 %v529
    %581 = vmatprep.subr.mxu0 0.0
    %582 = vmatpush1.msra.mxu0 %v530
    %583 = vmatprep.subr.mxu0 0.0
    %584 = vmatpush1.msra.mxu0 %v531
    %585 = vmatprep.subr.mxu0 0.0
    %586 = vmatpush1.msra.mxu0 %v532
    %587 = vmatprep.subr.mxu0 0.0
    %588 = vmatpush1.msra.mxu0 %v533
    %589 = vmatprep.subr.mxu0 0.0
    %590 = vmatpush1.msra.mxu0 %v534
    %591 = vmatprep.subr.mxu0 0.0
    %592 = vmatpush1.msra.mxu0 %v535
    %593 = vmatprep.subr.mxu0 0.0
    %594 = vmatpush1.msra.mxu0 %v536
    %595 = vmatprep.subr.mxu0 0.0
    %596 = vmatpush1.msra.mxu0 %v537
    %597 = vmatprep.subr.mxu0 0.0
    %598 = vmatpush1.msra.mxu0 %v538
    %599 = vmatprep.subr.mxu0 0.0
    %600 = vmatpush1.msra.mxu0 %v539
    %601 = vmatprep.subr.mxu0 0.0
    %602 = vmatpush1.msra.mxu0 %v540
    %603 = vmatprep.subr.mxu0 0.0
    %604 = vmatpush1.msra.mxu0 %v541
    %605 = vmatprep.subr.mxu0 0.0
    %606 = vmatpush1.msra.mxu0 %v542
    %607 = vmatprep.subr.mxu0 0.0
    %608 = vmatpush1.msra.mxu0 %v543
    %609 = vmatprep.subr.mxu0 0.0
    %610 = vmatpush1.msra.mxu0 %v544
    %611 = vmatprep.subr.mxu0 0.0
    %612 = vmatpush1.msra.mxu0 %v545
    %613 = vmatprep.subr.mxu0 0.0
    %614 = vmatpush1.msra.mxu0 %v546
    %615 = vmatprep.subr.mxu0 0.0
    %616 = vmatpush1.msra.mxu0 %v547
    %617 = vmatprep.subr.mxu0 0.0
    %618 = vmatpush1.msra.mxu0 %v548
    %619 = vmatprep.subr.mxu0 0.0
    %620 = vmatpush1.msra.mxu0 %v549
    %621 = vmatprep.subr.mxu0 0.0
    %622 = vmatpush1.msra.mxu0 %v550
    %623 = vmatprep.subr.mxu0 0.0
    %624 = vmatpush1.msra.mxu0 %v551
    %625 = vmatprep.subr.mxu0 0.0
    %626 = vmatpush1.msra.mxu0 %v552
    %627 = vmatprep.subr.mxu0 0.0
    %628 = vmatpush1.msra.mxu0 %v553
    %629 = vmatprep.subr.mxu0 0.0
    %630 = vmatpush1.msra.mxu0 %v554
    %631 = vmatprep.subr.mxu0 0.0
    %632 = vmatpush1.msra.mxu0 %v555
    %633 = vmatprep.subr.mxu0 0.0
    %634 = vmatpush1.msra.mxu0 %v556
    %635 = vmatprep.subr.mxu0 0.0
    %636 = vmatpush1.msra.mxu0 %v557
    %637 = vmatprep.subr.mxu0 0.0
    %638 = vmatpush1.msra.mxu0 %v558
    %639 = vmatprep.mubr.f32.mxu0 %v487
    %640 = vmatmul.mubr.f32.gmra.mrb[0].mxu0 %v507
    %v641 = vpop.f32.mrb[0].mxu0
    %v642 = vadd.f32 0.0, %v641
    %v643 = vpop.f32.mrb[0].mxu0
    %644 = vmatprep.mubr.f32.mxu0 %v488
    %645 = vmatmul.mubr.f32.gmra.mrb[0].mxu0 %v508
    %v646 = vpop.f32.mrb[0].mxu0
    %v647 = vadd.f32 0.0, %v646
    %v648 = vpop.f32.mrb[0].mxu0
    %649 = vmatprep.mubr.f32.mxu0 %v489
    %650 = vmatmul.mubr.f32.gmra.mrb[0].mxu0 %v509
    %v651 = vpop.f32.mrb[0].mxu0
    %v652 = vadd.f32 0.0, %v651
    %v653 = vpop.f32.mrb[0].mxu0
    %654 = vmatprep.mubr.f32.mxu0 %v490
    %655 = vmatmul.mubr.f32.gmra.mrb[0].mxu0 %v510
    %v656 = vpop.f32.mrb[0].mxu0
    %v657 = vadd.f32 0.0, %v656
    %v658 = vpop.f32.mrb[0].mxu0
    %659 = vdwg.mxu0
    %660 = vmatprep.subr.mxu0 0.0
    %661 = vmatpush1.msra.mxu0 %v559
    %662 = vmatprep.subr.mxu0 0.0
    %663 = vmatpush1.msra.mxu0 %v560
    %664 = vmatprep.subr.mxu0 0.0
    %665 = vmatpush1.msra.mxu0 %v561
    %666 = vmatprep.subr.mxu0 0.0
    %667 = vmatpush1.msra.mxu0 %v562
    %668 = vmatprep.subr.mxu0 0.0
    %669 = vmatpush1.msra.mxu0 %v563
    %670 = vmatprep.subr.mxu0 0.0
    %671 = vmatpush1.msra.mxu0 %v564
    %672 = vmatprep.subr.mxu0 0.0
    %673 = vmatpush1.msra.mxu0 %v565
    %674 = vmatprep.subr.mxu0 0.0
    %675 = vmatpush1.msra.mxu0 %v566
    %676 = vmatprep.subr.mxu0 0.0
    %677 = vmatpush1.msra.mxu0 %v567
    %678 = vmatprep.subr.mxu0 0.0
    %679 = vmatpush1.msra.mxu0 %v568
    %680 = vmatprep.subr.mxu0 0.0
    %681 = vmatpush1.msra.mxu0 %v569
    %682 = vmatprep.subr.mxu0 0.0
    %683 = vmatpush1.msra.mxu0 %v570
    %684 = vmatprep.subr.mxu0 0.0
    %685 = vmatpush1.msra.mxu0 %v571
    %686 = vmatprep.subr.mxu0 0.0
    %687 = vmatpush1.msra.mxu0 %v572
    %688 = vmatprep.subr.mxu0 0.0
    %689 = vmatpush1.msra.mxu0 %v573
    %690 = vmatprep.subr.mxu0 0.0
    %691 = vmatpush1.msra.mxu0 %v574
    %692 = vmatprep.subr.mxu0 0.0
    %693 = vmatpush1.msra.mxu0 0.0
    %694 = vmatprep.subr.mxu0 0.0
    %695 = vmatpush1.msra.mxu0 0.0
    %696 = vmatprep.subr.mxu0 0.0
    %697 = vmatpush1.msra.mxu0 0.0
    %698 = vmatprep.subr.mxu0 0.0
    %699 = vmatpush1.msra.mxu0 0.0
    %700 = vmatprep.subr.mxu0 0.0
    %701 = vmatpush1.msra.mxu0 0.0
    %702 = vmatprep.subr.mxu0 0.0
    %703 = vmatpush1.msra.mxu0 0.0
    %704 = vmatprep.subr.mxu0 0.0
    %705 = vmatpush1.msra.mxu0 0.0
    %706 = vmatprep.subr.mxu0 0.0
    %707 = vmatpush1.msra.mxu0 0.0
    %708 = vmatprep.subr.mxu0 0.0
    %709 = vmatpush1.msra.mxu0 0.0
    %710 = vmatprep.subr.mxu0 0.0
    %711 = vmatpush1.msra.mxu0 0.0
    %712 = vmatprep.subr.mxu0 0.0
    %713 = vmatpush1.msra.mxu0 0.0
    %714 = vmatprep.subr.mxu0 0.0
    %715 = vmatpush1.msra.mxu0 0.0
    %716 = vmatprep.subr.mxu0 0.0
    %717 = vmatpush1.msra.mxu0 0.0
    %718 = vmatprep.subr.mxu0 0.0
    %719 = vmatpush1.msra.mxu0 0.0
    %720 = vmatprep.subr.mxu0 0.0
    %721 = vmatpush1.msra.mxu0 0.0
    %722 = vmatprep.subr.mxu0 0.0
    %723 = vmatpush1.msra.mxu0 0.0
    %724 = vmatprep.mubr.f32.mxu0 0.0
    %725 = vmatmul.mubr.f32.gmra.mrb[0].mxu0 %v523
    %v726 = vpop.f32.mrb[0].mxu0
    %v727 = vadd.f32 %v642, %v726
    %v728 = vpop.f32.mrb[0].mxu0
    %729 = vmatprep.mubr.f32.mxu0 0.0
    %730 = vmatmul.mubr.f32.gmra.mrb[0].mxu0 %v524
    %v731 = vpop.f32.mrb[0].mxu0
    %v732 = vadd.f32 %v647, %v731
    %v733 = vpop.f32.mrb[0].mxu0
    %734 = vmatprep.mubr.f32.mxu0 0.0
    %735 = vmatmul.mubr.f32.gmra.mrb[0].mxu0 %v525
    %v736 = vpop.f32.mrb[0].mxu0
    %v737 = vadd.f32 %v652, %v736
    %v738 = vpop.f32.mrb[0].mxu0
    %739 = vmatprep.mubr.f32.mxu0 0.0
    %740 = vmatmul.mubr.f32.gmra.mrb[0].mxu0 %v526
    %v741 = vpop.f32.mrb[0].mxu0
    %v742 = vadd.f32 %v657, %v741
    %v743 = vpop.f32.mrb[0].mxu0
    %744 = vdwg.mxu0
    %v745 = vld [vmem:[%s5] sm:$0x3]
    %v746 = vadd.f32 %v727, %v732
    %v747 = vadd.f32 %v746, %v737
    %v748 = vadd.f32 %v747, %v742
    %v749 = vrot.slane %v748, 4
    %v750 = vadd.f32 %v748, %v749
    %v751 = vrot.slane %v750, 2
    %v752 = vadd.f32 %v750, %v751
    %v753 = vrot.slane %v752, 1
    %v754 = vadd.f32 %v752, %v753
    %v755 = vmul.f32 %v727, %v727
    %v756 = vmul.f32 %v732, %v732
    %v757 = vmul.f32 %v737, %v737
    %v758 = vmul.f32 %v742, %v742
    %v759 = vadd.f32 %v755, %v756
    %v760 = vadd.f32 %v759, %v757
    %v761 = vadd.f32 %v760, %v758
    %v762 = vrot.slane %v761, 4
    %v763 = vadd.f32 %v761, %v762
    %v764 = vrot.slane %v763, 2
    %v765 = vadd.f32 %v763, %v764
    %v766 = vrot.slane %v765, 1
    %v767 = vadd.f32 %v765, %v766
    %v768 = vsel %vm172, %v754, %v767
    %769 = vmatprep.subr.mxu0 0.0
    %770 = vmatpush1.msra.mxu0 %v79
    %771 = vmatprep.subr.mxu0 0.0
    %772 = vmatpush1.msra.mxu0 %v80
    %773 = vmatprep.subr.mxu0 0.0
    %774 = vmatpush1.msra.mxu0 %v81
    %775 = vmatprep.subr.mxu0 0.0
    %776 = vmatpush1.msra.mxu0 %v82
    %777 = vmatprep.subr.mxu0 0.0
    %778 = vmatpush1.msra.mxu0 %v83
    %779 = vmatprep.subr.mxu0 0.0
    %780 = vmatpush1.msra.mxu0 %v84
    %781 = vmatprep.subr.mxu0 0.0
    %782 = vmatpush1.msra.mxu0 %v85
    %783 = vmatprep.subr.mxu0 0.0
    %784 = vmatpush1.msra.mxu0 %v86
    %785 = vmatprep.subr.mxu0 0.0
    %786 = vmatpush1.msra.mxu0 %v87
    %787 = vmatprep.subr.mxu0 0.0
    %788 = vmatpush1.msra.mxu0 %v88
    %789 = vmatprep.subr.mxu0 0.0
    %790 = vmatpush1.msra.mxu0 %v89
    %791 = vmatprep.subr.mxu0 0.0
    %792 = vmatpush1.msra.mxu0 %v90
    %793 = vmatprep.subr.mxu0 0.0
    %794 = vmatpush1.msra.mxu0 %v91
    %795 = vmatprep.subr.mxu0 0.0
    %796 = vmatpush1.msra.mxu0 %v92
    %797 = vmatprep.subr.mxu0 0.0
    %798 = vmatpush1.msra.mxu0 %v93
    %799 = vmatprep.subr.mxu0 0.0
    %800 = vmatpush1.msra.mxu0 %v94
    %801 = vmatprep.subr.mxu0 0.0
    %802 = vmatpush1.msra.mxu0 0.0
    %803 = vmatprep.subr.mxu0 0.0
    %804 = vmatpush1.msra.mxu0 0.0
    %805 = vmatprep.subr.mxu0 0.0
    %806 = vmatpush1.msra.mxu0 0.0
    %807 = vmatprep.subr.mxu0 0.0
    %808 = vmatpush1.msra.mxu0 0.0
    %809 = vmatprep.subr.mxu0 0.0
    %810 = vmatpush1.msra.mxu0 0.0
    %811 = vmatprep.subr.mxu0 0.0
    %812 = vmatpush1.msra.mxu0 0.0
    %813 = vmatprep.subr.mxu0 0.0
    %814 = vmatpush1.msra.mxu0 0.0
    %815 = vmatprep.subr.mxu0 0.0
    %816 = vmatpush1.msra.mxu0 0.0
    %817 = vmatprep.subr.mxu0 0.0
    %818 = vmatpush1.msra.mxu0 0.0
    %819 = vmatprep.subr.mxu0 0.0
    %820 = vmatpush1.msra.mxu0 0.0
    %821 = vmatprep.subr.mxu0 0.0
    %822 = vmatpush1.msra.mxu0 0.0
    %823 = vmatprep.subr.mxu0 0.0
    %824 = vmatpush1.msra.mxu0 0.0
    %825 = vmatprep.subr.mxu0 0.0
    %826 = vmatpush1.msra.mxu0 0.0
    %827 = vmatprep.subr.mxu0 0.0
    %828 = vmatpush1.msra.mxu0 0.0
    %829 = vmatprep.subr.mxu0 0.0
    %830 = vmatpush1.msra.mxu0 0.0
    %831 = vmatprep.subr.mxu0 0.0
    %832 = vmatpush1.msra.mxu0 0.0
    %833 = vmatprep.mubr.f32.mxu0 0.0
    %834 = vmatmul.mubr.f32.gmra.mrb[0].mxu0 %v768
    %v835 = vpop.f32.mrb[0].mxu0
    %v836 = vadd.f32 0.0, %v835
    %v837 = vpop.f32.mrb[0].mxu0
    %838 = vdwg.mxu0
    %v839 = vmul.f32 %v836, 0.001953125
    %v840 = vmul.f32 %v839, %v839
    %v842 = vrot.slane %v840, 7
    %v844 = vsub.f32 %v839, %v842
    %v845 = vadd.f32 %v844, 1e-05
    %v846 = vrsqrt.pop %v845
    %v848 = vrot.slane %v846, 1
    %v850 = vmul.f32 %v745, %v848
    %v851 = vmul.f32 %v839, %v850
    %v853 = vrot.slane %v851, 7
    %v855 = vsub.f32 %v745, %v853
    %v856 = vlaneseq
    %v857 = vshrl.u32 %v856, 7
    %v858 = vsub.s32 0, %v857
    %v859 = vrot.slane %v850, %v858
    %v860 = vmul.f32 %v727, %v859
    %v861 = vmul.f32 %v732, %v859
    %v862 = vmul.f32 %v737, %v859
    %v863 = vmul.f32 %v742, %v859
    %v864 = vlaneseq
    %v865 = vshrl.u32 %v864, 7
    %v866 = vsub.s32 1, %v865
    %v867 = vrot.slane %v855, %v866
    %v868 = vadd.f32 %v860, %v867
    %v869 = vadd.f32 %v861, %v867
    %v870 = vadd.f32 %v862, %v867
    %v871 = vadd.f32 %v863, %v867
    %v872 = vmax.f32 %v868, 0.0
    %v873 = vmax.f32 %v869, 0.0
    %v874 = vmax.f32 %v870, 0.0
    %v875 = vmax.f32 %v871, 0.0
    %876 = vst [vmem:[#allocation10] sm:$0xff] %v872
    %877 = vst [vmem:[#allocation10 + $0x8] sm:$0xff] %v873
    %878 = vst [vmem:[#allocation10 + $0x10] sm:$0xff] %v874
    %879 = vst [vmem:[#allocation10 + $0x18] sm:$0xff] %v875
    // Predicated region
    $region42: #{tpu_custom_call.1} parent=1 // pred_check
      _
    $region43: #{tpu_custom_call.1} parent=1 // pred_check_branch
      %881 = sbr.rel (0) target = $region45
    $region44: #{tpu_custom_call.1} parent=1 // pred_region
      %s883 = ssub.s32 512, 512
      %884 = vsyncadd [#allocation4], %s883
      %s885 = sshll.u32 [#allocation10], 4
      %s886 = int_to_ptr.vmem [resolvable:$true] %s885
      %891 = dma.vmem_to_hbm [thread:$0]  %s886, 512, %s6, [#allocation4], 128, 128, 8
    $region45: #{tpu_custom_call.1} parent=1 // pred_fallthru
      _
    // Predicated region
    $region46: #{tpu_custom_call.1} parent=1 // pred_check
      _
    $region47: #{tpu_custom_call.1} parent=1 // pred_check_branch
      %893 = sbr.rel (0) target = $region49
    $region48: #{tpu_custom_call.1} parent=1 // pred_region
      %894 = dma.done [#allocation4], 512
    $region49: #{tpu_custom_call.1} parent=1 // pred_fallthru
      _
    %895 = vsyncpa [#allocation3], 1
    %896 = vsyncpa [#allocation6], 1
    %897 = vsyncpa [#allocation9], 1
    %898 = vsyncpa [#allocation4], 1

</llo_original>
